<compile_context>
chip_gen: v5e
topology: v5e:2x2
jax: 0.10.0
libtpu: 0.0.40
codegen_flags: <defaults>
</compile_context>

<pallas_src>
import jax
import jax.numpy as jnp
from jax.experimental import pallas as pl
from jax.experimental.pallas import tpu as pltpu


def _round_up(v, m):
    return -(-v // m) * m


def _vae_loss_kernel(kw_ref, recon_ref, x_ref, mu_ref, logvar_ref, out_ref, acc_ref):
    # kw_ref:     SMEM (1,)                 KL weight
    # recon_ref:  VMEM (tile_rows, LANE)    original dtype (cast in-kernel)
    # x_ref:      VMEM (tile_rows, LANE)
    # mu_ref:     VMEM (B, D)               resident (constant block index)
    # logvar_ref: VMEM (B, D)
    # out_ref:    VMEM (8, 128)             partial result tile for this split
    # acc_ref:    VMEM (8, LANE) f32        vreg-shaped running accumulator
    c = pl.program_id(0)            # split index ("parallel" -> TC shard on v7x)
    t = pl.program_id(1)            # tile index within split ("arbitrary")
    n_t = pl.num_programs(1)

    @pl.when(t == 0)
    def _init():
        acc_ref[...] = jnp.zeros_like(acc_ref)

    # Hot loop: pure VPU (cast + sub + mul + add), no per-tile XLU reduce.
    r = recon_ref[...].astype(jnp.float32)
    v = x_ref[...].astype(jnp.float32)
    d = r - v
    sq = d * d
    tr, ln = sq.shape
    # (tr, LANE) -> (tr//8, 8, LANE): sum over the leading dim is elementwise
    # vreg adds (no cross-lane movement); keeps the steady state DMA-bound.
    acc_ref[...] += sq.reshape(tr // 8, 8, ln).sum(axis=0)

    @pl.when(t == n_t - 1)
    def _finalize():
        partial_mse = jnp.sum(acc_ref[...])              # one XLU reduce per split
        mu_f = mu_ref[...].astype(jnp.float32)
        lv_f = logvar_ref[...].astype(jnp.float32)
        kl = -0.5 * jnp.sum(1.0 + lv_f - mu_f * mu_f - jnp.exp(lv_f))
        # KL term (tiny) is added exactly once, on split 0.
        val = partial_mse + jnp.where(c == 0, kw_ref[0] * kl, jnp.float32(0.0))
        out_ref[...] = jnp.full(out_ref.shape, val, dtype=out_ref.dtype)


def vae_loss(l_recon, x, mu, logvar, kl_weight,
             *, lane=1024, max_tile_rows=512, num_splits=2):
    """Pallas TPU implementation of VAELoss.forward. Returns a scalar f32."""
    assert l_recon.shape == x.shape
    assert mu.shape == logvar.shape

    n = int(l_recon.size)
    rows_needed = -(-n // lane)
    rows_per_split = max(1, -(-rows_needed // num_splits))
    tile_rows = min(max_tile_rows, _round_up(rows_per_split, 8))
    tiles_per_split = -(-rows_per_split // tile_rows)
    padded_rows = num_splits * tiles_per_split * tile_rows
    padded_elems = padded_rows * lane

    def to_slab(a):
        # Flatten row-major; zero-pad (exact for the squared-difference sum);
        # keep the ORIGINAL dtype so HBM traffic is not doubled by a wrapper cast.
        flat = a.reshape(-1)
        pad = padded_elems - flat.shape[0]
        if pad:
            flat = jnp.concatenate([flat, jnp.zeros((pad,), dtype=flat.dtype)])
        return flat.reshape(padded_rows, lane)

    recon_slab = to_slab(l_recon)
    x_slab = to_slab(x)
    mu2d = mu.reshape(mu.shape[0], -1)
    lv2d = logvar.reshape(logvar.shape[0], -1)
    kw = jnp.asarray([kl_weight], dtype=jnp.float32)

    itemsize = jnp.dtype(recon_slab.dtype).itemsize
    cost = pl.CostEstimate(
        flops=3 * padded_elems + 6 * int(mu.size),
        transcendentals=int(mu.size),
        bytes_accessed=(recon_slab.size + x_slab.size) * itemsize
        + int(mu2d.size + lv2d.size) * jnp.dtype(mu2d.dtype).itemsize
        + num_splits * 8 * 128 * 4,
    )

    out = pl.pallas_call(
        _vae_loss_kernel,
        out_shape=jax.ShapeDtypeStruct((num_splits * 8, 128), jnp.float32),
        grid=(num_splits, tiles_per_split),
        in_specs=[
            pl.BlockSpec(memory_space=pltpu.SMEM),                    # KL weight scalar
            pl.BlockSpec((tile_rows, lane),
                         lambda c, t: (c * tiles_per_split + t, 0)),  # l_recon slab
            pl.BlockSpec((tile_rows, lane),
                         lambda c, t: (c * tiles_per_split + t, 0)),  # x slab
            pl.BlockSpec(mu2d.shape, lambda c, t: (0, 0)),            # mu (resident)
            pl.BlockSpec(lv2d.shape, lambda c, t: (0, 0)),            # logvar (resident)
        ],
        out_specs=pl.BlockSpec((8, 128), lambda c, t: (c, 0)),
        scratch_shapes=[pltpu.VMEM((8, lane), jnp.float32)],          # vreg-shaped acc
        compiler_params=pltpu.CompilerParams(
            dimension_semantics=("parallel", "arbitrary"),
            vmem_limit_bytes=32 * 1024 * 1024,
        ),
        cost_estimate=cost,
    )(kw, recon_slab, x_slab, mu2d, lv2d)

    # One (8,128) tile per split, filled with that split's partial; sum them.
    return jnp.sum(out[::8, 0])


def vae_loss_ref(l_recon, x, mu, logvar, kl_weight):
    """Pure-JAX reference for correctness checking."""
    mse = jnp.sum((l_recon.astype(jnp.float32) - x.astype(jnp.float32)) ** 2)
    mu = mu.astype(jnp.float32)
    lv = logvar.astype(jnp.float32)
    kl = -0.5 * jnp.sum(1.0 + lv - mu * mu - jnp.exp(lv))
    return mse + kl_weight * kl


if __name__ == "__main__":
    key = jax.random.PRNGKey(0)
    k1, k2, k3, k4 = jax.random.split(key, 4)

    B, C, H, W = 2, 4, 16, 16   # image-like recon / target
    D = 32                      # latent dim for mu / logvar
    KL_weight = 0.25

    # --- f32 test (default tiling) ---
    l_recon = jax.random.normal(k1, (B, C, H, W), dtype=jnp.float32)
    x = jax.random.normal(k2, (B, C, H, W), dtype=jnp.float32)
    mu = jax.random.normal(k3, (B, D), dtype=jnp.float32) * 0.5
    logvar = jax.random.normal(k4, (B, D), dtype=jnp.float32) * 0.1

    loss = vae_loss(l_recon, x, mu, logvar, KL_weight)
    loss = jax.block_until_ready(loss)
    ref = vae_loss_ref(l_recon, x, mu, logvar, KL_weight)
    assert jnp.allclose(loss, ref, rtol=1e-5, atol=1e-4), (loss, ref)

    # --- bf16 test with small tiles to exercise the multi-tile reduction path ---
    l_recon_b = jax.random.normal(k1, (2, 4, 32, 32), dtype=jnp.bfloat16)
    x_b = jax.random.normal(k2, (2, 4, 32, 32), dtype=jnp.bfloat16)
    mu_b = (jax.random.normal(k3, (2, D), dtype=jnp.float32) * 0.5).astype(jnp.bfloat16)
    lv_b = (jax.random.normal(k4, (2, D), dtype=jnp.float32) * 0.1).astype(jnp.bfloat16)

    loss_b = vae_loss(l_recon_b, x_b, mu_b, lv_b, KL_weight,
                      lane=128, max_tile_rows=8)
    loss_b = jax.block_until_ready(loss_b)
    ref_b = vae_loss_ref(l_recon_b, x_b, mu_b, lv_b, KL_weight)
    assert jnp.allclose(loss_b, ref_b, rtol=2e-4, atol=1e-2), (loss_b, ref_b)

    print("KERNEL_OK")
</pallas_src>

<mosaic_0001>
module attributes {stable_mosaic.version = 11 : i64} {
  func.func @_vae_loss_kernel(%arg0: i32, %arg1: i32, %arg2: memref<1xf32, #tpu.memory_space<smem>>, %arg3: memref<8x1024xf32, #tpu.memory_space<vmem>>, %arg4: memref<8x1024xf32, #tpu.memory_space<vmem>>, %arg5: memref<2x32xf32, #tpu.memory_space<vmem>>, %arg6: memref<2x32xf32, #tpu.memory_space<vmem>>, %arg7: memref<8x128xf32, #tpu.memory_space<vmem>>, %arg8: memref<8x1024xf32, #tpu.memory_space<vmem>>) attributes {dimension_semantics = [#tpu.dimension_semantics<parallel>, #tpu.dimension_semantics<arbitrary>], iteration_bounds = array<i64: 2, 1>, scalar_prefetch = 0 : i64, scratch_operands = 1 : i64, tpu.core_type = #tpu.core_type<tc>, window_params = [{transform_indices = @transform_0, window_bounds = array<i64: 1>}, {transform_indices = @transform_1, window_bounds = array<i64: 8, 1024>}, {transform_indices = @transform_2, window_bounds = array<i64: 8, 1024>}, {pipeline_mode = #tpu.pipeline_mode<synchronous>, transform_indices = @transform_3, window_bounds = array<i64: 2, 32>}, {pipeline_mode = #tpu.pipeline_mode<synchronous>, transform_indices = @transform_4, window_bounds = array<i64: 2, 32>}, {transform_indices = @transform_5, window_bounds = array<i64: 8, 128>}]} {
    %c0_i32 = arith.constant 0 : i32
    %0 = arith.cmpi eq, %arg1, %c0_i32 : i32
    %1 = arith.extui %0 : i1 to i32
    %c0_i32_0 = arith.constant 0 : i32
    %2 = arith.cmpi ne, %1, %c0_i32_0 : i32
    scf.if %2 {
      %cst_10 = arith.constant 0.000000e+00 : f32
      %15 = vector.broadcast %cst_10 : f32 to vector<8x1024xf32>
      %c0_11 = arith.constant 0 : index
      %c0_12 = arith.constant 0 : index
      %16 = vector.load %arg8[%c0_11, %c0_12] : memref<8x1024xf32, #tpu.memory_space<vmem>>, vector<8x1024xf32>
      tpu.vector_store %arg8[%c0_11, %c0_12], %15 {strides = array<i32>} : memref<8x1024xf32, #tpu.memory_space<vmem>>, vector<8x1024xf32>,
    } else {
    }
    %c0 = arith.constant 0 : index
    %c0_1 = arith.constant 0 : index
    %3 = vector.load %arg3[%c0, %c0_1] : memref<8x1024xf32, #tpu.memory_space<vmem>>, vector<8x1024xf32>
    %c0_2 = arith.constant 0 : index
    %c0_3 = arith.constant 0 : index
    %4 = vector.load %arg4[%c0_2, %c0_3] : memref<8x1024xf32, #tpu.memory_space<vmem>>, vector<8x1024xf32>
    %5 = arith.subf %3, %4 : vector<8x1024xf32>
    %6 = arith.mulf %5, %5 : vector<8x1024xf32>
    %c0_4 = arith.constant 0 : index
    %c0_5 = arith.constant 0 : index
    %7 = vector.load %arg8[%c0_4, %c0_5] : memref<8x1024xf32, #tpu.memory_space<vmem>>, vector<8x1024xf32>
    %8 = vector.shape_cast %6 : vector<8x1024xf32> to vector<1x8x1024xf32>
    %cst = arith.constant dense<0.000000e+00> : vector<8x1024xf32>
    %9 = vector.multi_reduction <add>, %8, %cst [0] : vector<1x8x1024xf32> to vector<8x1024xf32>
    %10 = arith.addf %7, %9 : vector<8x1024xf32>
    %c0_6 = arith.constant 0 : index
    %c0_7 = arith.constant 0 : index
    %11 = vector.load %arg8[%c0_6, %c0_7] : memref<8x1024xf32, #tpu.memory_space<vmem>>, vector<8x1024xf32>
    tpu.vector_store %arg8[%c0_6, %c0_7], %10 {strides = array<i32>} : memref<8x1024xf32, #tpu.memory_space<vmem>>, vector<8x1024xf32>,
    %c0_i32_8 = arith.constant 0 : i32
    %12 = arith.cmpi eq, %arg1, %c0_i32_8 : i32
    %13 = arith.extui %12 : i1 to i32
    %c0_i32_9 = arith.constant 0 : i32
    %14 = arith.cmpi ne, %13, %c0_i32_9 : i32
    scf.if %14 {
      %c0_10 = arith.constant 0 : index
      %c0_11 = arith.constant 0 : index
      %15 = vector.load %arg8[%c0_10, %c0_11] : memref<8x1024xf32, #tpu.memory_space<vmem>>, vector<8x1024xf32>
      %16 = vector.shape_cast %15 : vector<8x1024xf32> to vector<1x8x1024xf32>
      %cst_12 = arith.constant dense<0.000000e+00> : vector<1xf32>
      %17 = vector.multi_reduction <add>, %16, %cst_12 [1, 2] : vector<1x8x1024xf32> to vector<1xf32>
      %18 = vector.shape_cast %17 : vector<1xf32> to vector<1x1x1xf32>
      %19 = vector.extract %18[0, 0, 0] : f32 from vector<1x1x1xf32>
      %c0_13 = arith.constant 0 : index
      %c0_14 = arith.constant 0 : index
      %20 = vector.load %arg5[%c0_13, %c0_14] : memref<2x32xf32, #tpu.memory_space<vmem>>, vector<2x32xf32>
      %c0_15 = arith.constant 0 : index
      %c0_16 = arith.constant 0 : index
      %21 = vector.load %arg6[%c0_15, %c0_16] : memref<2x32xf32, #tpu.memory_space<vmem>>, vector<2x32xf32>
      %cst_17 = arith.constant 1.000000e+00 : f32
      %22 = vector.broadcast %cst_17 : f32 to vector<2x32xf32>
      %23 = arith.addf %22, %21 : vector<2x32xf32>
      %24 = arith.mulf %20, %20 : vector<2x32xf32>
      %25 = arith.subf %23, %24 : vector<2x32xf32>
      %26 = math.exp %21 : vector<2x32xf32>
      %27 = arith.subf %25, %26 : vector<2x32xf32>
      %28 = vector.shape_cast %27 : vector<2x32xf32> to vector<1x2x32xf32>
      %cst_18 = arith.constant dense<0.000000e+00> : vector<1xf32>
      %29 = vector.multi_reduction <add>, %28, %cst_18 [1, 2] : vector<1x2x32xf32> to vector<1xf32>
      %30 = vector.shape_cast %29 : vector<1xf32> to vector<1x1x1xf32>
      %31 = vector.extract %30[0, 0, 0] : f32 from vector<1x1x1xf32>
      %cst_19 = arith.constant -5.000000e-01 : f32
      %32 = arith.mulf %cst_19, %31 : f32
      %c0_i32_20 = arith.constant 0 : i32
      %33 = arith.cmpi eq, %arg0, %c0_i32_20 : i32
      %c0_21 = arith.constant 0 : index
      %34 = memref.load %arg2[%c0_21] : memref<1xf32, #tpu.memory_space<smem>>
      %35 = arith.mulf %34, %32 : f32
      %cst_22 = arith.constant 0.000000e+00 : f32
      %36 = arith.select %33, %35, %cst_22 : f32
      %37 = arith.addf %19, %36 : f32
      %38 = vector.broadcast %37 : f32 to vector<8x128xf32>
      %c0_23 = arith.constant 0 : index
      %c0_24 = arith.constant 0 : index
      %39 = vector.load %arg7[%c0_23, %c0_24] : memref<8x128xf32, #tpu.memory_space<vmem>>, vector<8x128xf32>
      tpu.vector_store %arg7[%c0_23, %c0_24], %38 {strides = array<i32>} : memref<8x128xf32, #tpu.memory_space<vmem>>, vector<8x128xf32>,
    } else {
    }
    return
  }
  func.func @transform_0(%arg0: i32, %arg1: i32) -> i32 {
    %c0_i32 = arith.constant 0 : i32
    %c0_i32_0 = arith.constant 0 : i32
    return %c0_i32 : i32
  }
  func.func @transform_1(%arg0: i32, %arg1: i32) -> (i32, i32) {
    %c1_i32 = arith.constant 1 : i32
    %0 = arith.muli %arg0, %c1_i32 : i32
    %1 = arith.addi %0, %arg1 : i32
    %c0_i32 = arith.constant 0 : i32
    %c0_i32_0 = arith.constant 0 : i32
    return %1, %c0_i32 : i32, i32
  }
  func.func @transform_2(%arg0: i32, %arg1: i32) -> (i32, i32) {
    %c1_i32 = arith.constant 1 : i32
    %0 = arith.muli %arg0, %c1_i32 : i32
    %1 = arith.addi %0, %arg1 : i32
    %c0_i32 = arith.constant 0 : i32
    %c0_i32_0 = arith.constant 0 : i32
    return %1, %c0_i32 : i32, i32
  }
  func.func @transform_3(%arg0: i32, %arg1: i32) -> (i32, i32) {
    %c0_i32 = arith.constant 0 : i32
    %c0_i32_0 = arith.constant 0 : i32
    %c0_i32_1 = arith.constant 0 : i32
    return %c0_i32, %c0_i32_0 : i32, i32
  }
  func.func @transform_4(%arg0: i32, %arg1: i32) -> (i32, i32) {
    %c0_i32 = arith.constant 0 : i32
    %c0_i32_0 = arith.constant 0 : i32
    %c0_i32_1 = arith.constant 0 : i32
    return %c0_i32, %c0_i32_0 : i32, i32
  }
  func.func @transform_5(%arg0: i32, %arg1: i32) -> (i32, i32) {
    %c0_i32 = arith.constant 0 : i32
    %c0_i32_0 = arith.constant 0 : i32
    return %arg0, %c0_i32 : i32, i32
  }
}

</mosaic_0001>

<llo_original>
// kernel: tpu_custom_call.1
$region0: #{tpu_custom_call.1}
  #allocation0 [shape = 'u32[]', space=smem, size = 0x4, offset = 0x4, fixed_abs, tag = 'smem constant byte address 0x4 - core index']
  #allocation1 [shape = 'u32[72,128]{1,0:T(1,128)}', space=vmem, size = 0x9000, scoped, tag = 'internal scratch']
  #allocation2 [shape = 'f32[8,1024]{1,0:T(8,128)}', space=vmem, size = 0x8000, scoped, tag = 'scratch operand']
  #allocation3 [shape = 'f32[1]{0:T(128)S(6)}', space=smem, size = 0x200, scoped, tag = 'scoped memory for tpu_custom_call.1']
  %s0 = inlined_call_operand.<no memory space> [shape: f32[1], index: 0, kind: input, shape index: {}]
  %s1 = inlined_call_operand.hbm [shape: f32[16,1024], index: 1, kind: input, shape index: {}]
  %s2 = inlined_call_operand.hbm [shape: f32[16,1024], index: 2, kind: input, shape index: {}]
  %s3 = inlined_call_operand.vmem [shape: f32[2,32], index: 3, kind: input, shape index: {}]
  %s4 = inlined_call_operand.vmem [shape: f32[2,32], index: 4, kind: input, shape index: {}]
  %s5 = inlined_call_operand.hbm [shape: f32[16,128], index: 5, kind: output, shape index: {}]
  %s6 = sld [smem:[#allocation0]]
  $region69: #{tpu_custom_call.1} parent=0
    _
  %s8 = ssub.s32 1, %s6
  %s9 = scalar_select 0, %s8, %s6
  %10 = sst [smem:[#allocation3]] %s0
  $region1: #{tpu_custom_call.1} parent=0
    #allocation4 [shape = 'u8[65536]{0}', space=vmem, size = 0x10000, scoped, tag = 'input window, operand 1']
    #allocation5 [shape = 's32[2]{0}', space=sflag, size = 0x8, scoped, tag = 'scoped memory for tpu_custom_call.1']
    #allocation6 [shape = 's32[2]{0}', space=sflag, size = 0x8, scoped, tag = 'scoped memory for tpu_custom_call.1']
    #allocation7 [shape = 'u8[65536]{0}', space=vmem, size = 0x10000, scoped, tag = 'input window, operand 2']
    #allocation8 [shape = 's32[2]{0}', space=sflag, size = 0x8, scoped, tag = 'scoped memory for tpu_custom_call.1']
    #allocation9 [shape = 'u8[8192]{0}', space=vmem, size = 0x2000, scoped, tag = 'output window, operand 0']
    %11 = vsyncpa [#allocation5], 0
    %s12 = scalar_lea.sflag [#allocation5], 1
    %13 = vsyncpa %s12, 0
    %14 = vsyncpa [#allocation8], 0
    %s15 = scalar_lea.sflag [#allocation8], 1
    %16 = vsyncpa %s15, 0
    %17 = vsyncpa [#allocation6], 0
    %s18 = scalar_lea.sflag [#allocation6], 1
    %19 = vsyncpa %s18, 0
    loop: start=0, step=1, limit=4
    $region2: #{tpu_custom_call.1} parent=1 // loop_pre_header
      _
    $region3: #{tpu_custom_call.1} parent=1 // loop_header
      %s21 = sphi 0, %s25
      %p22 = scmp.ge.s32.totalorder %s21, 4
      %s28 = sphi 0, %s40
      %s29 = sphi 0, %s36
      %s30 = sphi 0, %s28
      %s31 = sphi 0, %s29
      %s32 = sphi 0, %s30
      %s33 = sphi 0, %s31
      %s41 = sphi 0, %s41
      %s43 = sphi 0, %s41
      %s44 = sphi 0, %s43
      %s58 = sphi 0, %s44
      %s66 = sphi 0, %s68
      %s69 = sphi 0, %s66
      %s70 = sphi 0, %s69
      %s86 = sphi 0, %s70
      %s94 = sphi 0, %s96
      %s97 = sphi 0, %s94
      %s98 = sphi 0, %s97
      %s114 = sphi 0, %s98
      %s118 = sphi 0, %s118
      %s120 = sphi 0, %s118
      %s121 = sphi 0, %s120
      %s135 = sphi 0, %s121
      %s139 = sphi 0, %s139
      %s141 = sphi 0, %s139
      %s142 = sphi 0, %s141
      %s156 = sphi 0, %s142
      %s162 = sphi 0, %s164
      %s165 = sphi 0, %s162
      %s166 = sphi 0, %s165
      %s182 = sphi 0, %s166
    $region4: #{tpu_custom_call.1} parent=1 // loop_header_branch
      %24 = sbr.rel (%p22) target = $region8
    $region5: #{tpu_custom_call.1} parent=1 // loop_body
      %s26 = ssub.s32 %s21, 1
      %s27 = ssub.s32 %s21, 2
      %s34 = sadd.s32 1, %s29
      %p35 = scmp.ge.s32.totalorder %s34, 1
      %s36 = scalar_select %p35, 0, %s34
      %s37 = sadd.s32 1, %s28
      %s38 = scalar_select %p35, %s37, %s28
      %p39 = scmp.ge.s32.totalorder %s38, 2
      %s40 = scalar_select %p39, 0, %s38
      %s42 = sadd.s32 %s41, 1
      %p45 = scmp.eq.s32.totalorder %s21, 1
      %p46 = scmp.ne.s32.totalorder %s41, %s43
      %p47 = scmp.eq.s32.totalorder %s21, 0
      %p48 = por %p46, %p47
      %p49 = scmp.ne.s32.totalorder %s41, %s43
      %p50 = scmp.eq.s32.totalorder %s26, 1
      %p51 = por %p49, %p50
      %p52 = scmp.ne.s32.totalorder %s43, %s44
      %p53 = scmp.eq.s32.totalorder %s26, 0
      %p54 = por %p52, %p53
      %p55 = scmp.ne.s32.totalorder %s43, %s44
      %p56 = scmp.eq.s32.totalorder %s27, 1
      %p57 = por %p55, %p56
      %p59 = scmp.ne.s32.totalorder %s44, %s58
      %p60 = scmp.eq.s32.totalorder %s27, 0
      %p61 = por %p59, %p60
      %s62 = sadd.s32 %s28, %s29
      %s63 = sadd.s32 %s40, %s36
      %s64 = ssub.s32 %s62, %s63
      %p65 = scmp.eq.s32.totalorder %s64, 0
      %s67 = sadd.s32 %s66, 1
      %s68 = scalar_select %p65, %s66, %s67
      %p71 = pneg %p65
      %p72 = scmp.eq.s32.totalorder %s21, 1
      %p73 = por %p71, %p72
      %p74 = scmp.ne.s32.totalorder %s66, %s69
      %p75 = scmp.eq.s32.totalorder %s21, 0
      %p76 = por %p74, %p75
      %p77 = scmp.ne.s32.totalorder %s66, %s69
      %p78 = scmp.eq.s32.totalorder %s26, 1
      %p79 = por %p77, %p78
      %p80 = scmp.ne.s32.totalorder %s69, %s70
      %p81 = scmp.eq.s32.totalorder %s26, 0
      %p82 = por %p80, %p81
      %p83 = scmp.ne.s32.totalorder %s69, %s70
      %p84 = scmp.eq.s32.totalorder %s27, 1
      %p85 = por %p83, %p84
      %p87 = scmp.ne.s32.totalorder %s70, %s86
      %p88 = scmp.eq.s32.totalorder %s27, 0
      %p89 = por %p87, %p88
      %s90 = sadd.s32 %s28, %s29
      %s91 = sadd.s32 %s40, %s36
      %s92 = ssub.s32 %s90, %s91
      %p93 = scmp.eq.s32.totalorder %s92, 0
      %s95 = sadd.s32 %s94, 1
      %s96 = scalar_select %p93, %s94, %s95
      %p99 = pneg %p93
      %p100 = scmp.eq.s32.totalorder %s21, 1
      %p101 = por %p99, %p100
      %p102 = scmp.ne.s32.totalorder %s94, %s97
      %p103 = scmp.eq.s32.totalorder %s21, 0
      %p104 = por %p102, %p103
      %p105 = scmp.ne.s32.totalorder %s94, %s97
      %p106 = scmp.eq.s32.totalorder %s26, 1
      %p107 = por %p105, %p106
      %p108 = scmp.ne.s32.totalorder %s97, %s98
      %p109 = scmp.eq.s32.totalorder %s26, 0
      %p110 = por %p108, %p109
      %p111 = scmp.ne.s32.totalorder %s97, %s98
      %p112 = scmp.eq.s32.totalorder %s27, 1
      %p113 = por %p111, %p112
      %p115 = scmp.ne.s32.totalorder %s98, %s114
      %p116 = scmp.eq.s32.totalorder %s27, 0
      %p117 = por %p115, %p116
      %s119 = sadd.s32 %s118, 1
      %p122 = scmp.eq.s32.totalorder %s21, 1
      %p123 = scmp.ne.s32.totalorder %s118, %s120
      %p124 = scmp.eq.s32.totalorder %s21, 0
      %p125 = por %p123, %p124
      %p126 = scmp.ne.s32.totalorder %s118, %s120
      %p127 = scmp.eq.s32.totalorder %s26, 1
      %p128 = por %p126, %p127
      %p129 = scmp.ne.s32.totalorder %s120, %s121
      %p130 = scmp.eq.s32.totalorder %s26, 0
      %p131 = por %p129, %p130
      %p132 = scmp.ne.s32.totalorder %s120, %s121
      %p133 = scmp.eq.s32.totalorder %s27, 1
      %p134 = por %p132, %p133
      %p136 = scmp.ne.s32.totalorder %s121, %s135
      %p137 = scmp.eq.s32.totalorder %s27, 0
      %p138 = por %p136, %p137
      %s140 = sadd.s32 %s139, 1
      %p143 = scmp.eq.s32.totalorder %s21, 1
      %p144 = scmp.ne.s32.totalorder %s139, %s141
      %p145 = scmp.eq.s32.totalorder %s21, 0
      %p146 = por %p144, %p145
      %p147 = scmp.ne.s32.totalorder %s139, %s141
      %p148 = scmp.eq.s32.totalorder %s26, 1
      %p149 = por %p147, %p148
      %p150 = scmp.ne.s32.totalorder %s141, %s142
      %p151 = scmp.eq.s32.totalorder %s26, 0
      %p152 = por %p150, %p151
      %p153 = scmp.ne.s32.totalorder %s141, %s142
      %p154 = scmp.eq.s32.totalorder %s27, 1
      %p155 = por %p153, %p154
      %p157 = scmp.ne.s32.totalorder %s142, %s156
      %p158 = scmp.eq.s32.totalorder %s27, 0
      %p159 = por %p157, %p158
      %s160 = ssub.s32 %s28, %s40
      %p161 = scmp.eq.s32.totalorder %s160, 0
      %s163 = sadd.s32 %s162, 1
      %s164 = scalar_select %p161, %s162, %s163
      %p167 = pneg %p161
      %p168 = scmp.eq.s32.totalorder %s21, 1
      %p169 = por %p167, %p168
      %p170 = scmp.ne.s32.totalorder %s162, %s165
      %p171 = scmp.eq.s32.totalorder %s21, 0
      %p172 = por %p170, %p171
      %p173 = scmp.ne.s32.totalorder %s162, %s165
      %p174 = scmp.eq.s32.totalorder %s26, 1
      %p175 = por %p173, %p174
      %p176 = scmp.ne.s32.totalorder %s165, %s166
      %p177 = scmp.eq.s32.totalorder %s26, 0
      %p178 = por %p176, %p177
      %p179 = scmp.ne.s32.totalorder %s165, %s166
      %p180 = scmp.eq.s32.totalorder %s27, 1
      %p181 = por %p179, %p180
      %p183 = scmp.ne.s32.totalorder %s166, %s182
      %p184 = scmp.eq.s32.totalorder %s27, 0
      %p185 = por %p183, %p184
      %p186 = scmp.le.s32.totalorder 1, %s21
      %p187 = scmp.lt.s32.totalorder %s21, 3
      %p188 = pnand %p186, %p187
      %p189 = pneg %p188
      // Predicated region
      $region9: #{tpu_custom_call.1} parent=5 // pred_check
        _
      $region10: #{tpu_custom_call.1} parent=5 // pred_check_branch
        %191 = sbr.rel (%p188) target = $region12
      $region11: #{tpu_custom_call.1} parent=5 // pred_region
        %s192 = ssub.s32 %s21, 1
        // Predicated region
        $region13: #{tpu_custom_call.1} parent=11 // pred_check
          %p193 = pneg %p54
        $region14: #{tpu_custom_call.1} parent=11 // pred_check_branch
          %195 = sbr.rel (%p193) target = $region16
        $region15: #{tpu_custom_call.1} parent=11 // pred_region
          _
        $region16: #{tpu_custom_call.1} parent=11 // pred_fallthru
          _
        // Predicated region
        $region17: #{tpu_custom_call.1} parent=11 // pred_check
          %p196 = pneg %p131
        $region18: #{tpu_custom_call.1} parent=11 // pred_check_branch
          %198 = sbr.rel (%p196) target = $region20
        $region19: #{tpu_custom_call.1} parent=11 // pred_region
          _
        $region20: #{tpu_custom_call.1} parent=11 // pred_fallthru
          _
        // Predicated region
        $region21: #{tpu_custom_call.1} parent=11 // pred_check
          %p199 = pneg %p152
        $region22: #{tpu_custom_call.1} parent=11 // pred_check_branch
          %201 = sbr.rel (%p199) target = $region24
        $region23: #{tpu_custom_call.1} parent=11 // pred_region
          _
        $region24: #{tpu_custom_call.1} parent=11 // pred_fallthru
          _
      $region12: #{tpu_custom_call.1} parent=5 // pred_fallthru
        _
      %p202 = scmp.lt.s32.totalorder %s21, 2
      // Predicated region
      $region25: #{tpu_custom_call.1} parent=5 // pred_check
        %p203 = pneg %p202
      $region26: #{tpu_custom_call.1} parent=5 // pred_check_branch
        %205 = sbr.rel (%p203) target = $region28
      $region27: #{tpu_custom_call.1} parent=5 // pred_region
        // Predicated region
        $region29: #{tpu_custom_call.1} parent=27 // pred_check
          %p206 = pneg %p76
        $region30: #{tpu_custom_call.1} parent=27 // pred_check_branch
          %208 = sbr.rel (%p206) target = $region32
        $region31: #{tpu_custom_call.1} parent=27 // pred_region
          %s209 = sand.u32 %s66, 1
          %s210 = scalar_lea.sflag [#allocation5], %s209
          %s211 = sand.u32 %s66, 1
          %s212 = smul.addr %s211, 64
          %s213 = scalar_lea.vmem [#allocation4], %s212
          %s214 = sadd.s32 %s28, %s29
          %216 = vsyncadd %s210, 0
          %s217 = smul.addr %s214, 8
          %s218 = smul.addr %s217, 8
          %s219 = scalar_lea.hbm %s1, %s218
          %s221 = sshll.u32 %s219, 4
          %s222 = int_to_ptr.hbm [resolvable:$true] %s221
          %s223 = sshll.u32 %s213, 4
          %s224 = int_to_ptr.vmem [resolvable:$true] %s223
          %226 = dma.hbm_to_vmem [thread:$0]  %s222, 1024, %s224, %s210
        $region32: #{tpu_custom_call.1} parent=27 // pred_fallthru
          _
        // Predicated region
        $region33: #{tpu_custom_call.1} parent=27 // pred_check
          %p227 = pneg %p104
        $region34: #{tpu_custom_call.1} parent=27 // pred_check_branch
          %229 = sbr.rel (%p227) target = $region36
        $region35: #{tpu_custom_call.1} parent=27 // pred_region
          %s230 = sand.u32 %s94, 1
          %s231 = scalar_lea.sflag [#allocation8], %s230
          %s232 = sand.u32 %s94, 1
          %s233 = smul.addr %s232, 64
          %s234 = scalar_lea.vmem [#allocation7], %s233
          %s235 = sadd.s32 %s28, %s29
          %237 = vsyncadd %s231, 0
          %s238 = smul.addr %s235, 8
          %s239 = smul.addr %s238, 8
          %s240 = scalar_lea.hbm %s2, %s239
          %s242 = sshll.u32 %s240, 4
          %s243 = int_to_ptr.hbm [resolvable:$true] %s242
          %s244 = sshll.u32 %s234, 4
          %s245 = int_to_ptr.vmem [resolvable:$true] %s244
          %247 = dma.hbm_to_vmem [thread:$0]  %s243, 1024, %s245, %s231
        $region36: #{tpu_custom_call.1} parent=27 // pred_fallthru
          _
      $region28: #{tpu_custom_call.1} parent=5 // pred_fallthru
        _
      %p248 = scmp.le.s32.totalorder 1, %s21
      %p249 = scmp.lt.s32.totalorder %s21, 3
      %p250 = pnand %p248, %p249
      %p251 = pneg %p250
      // Predicated region
      $region37: #{tpu_custom_call.1} parent=5 // pred_check
        _
      $region38: #{tpu_custom_call.1} parent=5 // pred_check_branch
        %253 = sbr.rel (%p250) target = $region40
      $region39: #{tpu_custom_call.1} parent=5 // pred_region
        %s254 = ssub.s32 %s21, 1
        %s255 = sand.u32 %s69, 1
        %s256 = scalar_lea.sflag [#allocation5], %s255
        %s257 = sand.u32 %s69, 1
        %s258 = smul.addr %s257, 64
        %s259 = scalar_lea.vmem [#allocation4], %s258
        // Predicated region
        $region41: #{tpu_custom_call.1} parent=39 // pred_check
          %p260 = pneg %p82
        $region42: #{tpu_custom_call.1} parent=39 // pred_check_branch
          %262 = sbr.rel (%p260) target = $region44
        $region43: #{tpu_custom_call.1} parent=39 // pred_region
          %264 = dma.done %s256, 1024
        $region44: #{tpu_custom_call.1} parent=39 // pred_fallthru
          _
        %s265 = sand.u32 %s97, 1
        %s266 = scalar_lea.sflag [#allocation8], %s265
        %s267 = sand.u32 %s97, 1
        %s268 = smul.addr %s267, 64
        %s269 = scalar_lea.vmem [#allocation7], %s268
        // Predicated region
        $region45: #{tpu_custom_call.1} parent=39 // pred_check
          %p270 = pneg %p110
        $region46: #{tpu_custom_call.1} parent=39 // pred_check_branch
          %272 = sbr.rel (%p270) target = $region48
        $region47: #{tpu_custom_call.1} parent=39 // pred_region
          %274 = dma.done %s266, 1024
        $region48: #{tpu_custom_call.1} parent=39 // pred_fallthru
          _
        %p275 = pneg %p54
        %p276 = pneg %p51
        %s277 = sand.u32 %s69, 1
        %s278 = scalar_lea.sflag [#allocation5], %s277
        %s279 = sand.u32 %s69, 1
        %s280 = smul.addr %s279, 64
        %s281 = scalar_lea.vmem [#allocation4], %s280
        %p282 = pneg %p82
        %p283 = pneg %p79
        %s284 = sand.u32 %s97, 1
        %s285 = scalar_lea.sflag [#allocation8], %s284
        %s286 = sand.u32 %s97, 1
        %s287 = smul.addr %s286, 64
        %s288 = scalar_lea.vmem [#allocation7], %s287
        %p289 = pneg %p110
        %p290 = pneg %p107
        %p291 = pneg %p131
        %p292 = pneg %p128
        %p293 = pneg %p152
        %p294 = pneg %p149
        %p295 = pneg %p178
        %p296 = pneg %p175
        %s297 = sand.u32 %s165, 1
        %s298 = scalar_lea.sflag [#allocation6], %s297
        %s299 = sand.u32 %s165, 1
        %s300 = smul.addr %s299, 8
        %s301 = scalar_lea.vmem [#allocation9], %s300
        %s302 = sadd.s32 %s30, %s31
        %s303 = sadd.s32 %s30, %s31
        %p304 = scmp.eq.s32.totalorder %s31, 0
        // Predicated region
        $region49: #{tpu_custom_call.1} parent=39 // pred_check
          %p305 = pneg %p304
        $region50: #{tpu_custom_call.1} parent=39 // pred_check_branch
          %307 = sbr.rel (%p305) target = $region52
        $region51: #{tpu_custom_call.1} parent=39 // pred_region
          %308 = vst [vmem:[#allocation2] sm:$0xff] 0.0
          %309 = vst [vmem:[#allocation2 + $0x8] sm:$0xff] 0.0
          %310 = vst [vmem:[#allocation2 + $0x10] sm:$0xff] 0.0
          %311 = vst [vmem:[#allocation2 + $0x18] sm:$0xff] 0.0
          %312 = vst [vmem:[#allocation2 + $0x20] sm:$0xff] 0.0
          %313 = vst [vmem:[#allocation2 + $0x28] sm:$0xff] 0.0
          %314 = vst [vmem:[#allocation2 + $0x30] sm:$0xff] 0.0
          %315 = vst [vmem:[#allocation2 + $0x38] sm:$0xff] 0.0
        $region52: #{tpu_custom_call.1} parent=39 // pred_fallthru
          _
        %v316 = vld [vmem:[%s259] sm:$0xff]
        %v317 = vld [vmem:[%s259 + $0x8] sm:$0xff]
        %v318 = vld [vmem:[%s259 + $0x10] sm:$0xff]
        %v319 = vld [vmem:[%s259 + $0x18] sm:$0xff]
        %v320 = vld [vmem:[%s259 + $0x20] sm:$0xff]
        %v321 = vld [vmem:[%s259 + $0x28] sm:$0xff]
        %v322 = vld [vmem:[%s259 + $0x30] sm:$0xff]
        %v323 = vld [vmem:[%s259 + $0x38] sm:$0xff]
        %v324 = vld [vmem:[%s269] sm:$0xff]
        %v325 = vld [vmem:[%s269 + $0x8] sm:$0xff]
        %v326 = vld [vmem:[%s269 + $0x10] sm:$0xff]
        %v327 = vld [vmem:[%s269 + $0x18] sm:$0xff]
        %v328 = vld [vmem:[%s269 + $0x20] sm:$0xff]
        %v329 = vld [vmem:[%s269 + $0x28] sm:$0xff]
        %v330 = vld [vmem:[%s269 + $0x30] sm:$0xff]
        %v331 = vld [vmem:[%s269 + $0x38] sm:$0xff]
        %v332 = vsub.f32 %v316, %v324
        %v333 = vsub.f32 %v317, %v325
        %v334 = vsub.f32 %v318, %v326
        %v335 = vsub.f32 %v319, %v327
        %v336 = vsub.f32 %v320, %v328
        %v337 = vsub.f32 %v321, %v329
        %v338 = vsub.f32 %v322, %v330
        %v339 = vsub.f32 %v323, %v331
        %v340 = vmul.f32 %v332, %v332
        %v341 = vmul.f32 %v333, %v333
        %v342 = vmul.f32 %v334, %v334
        %v343 = vmul.f32 %v335, %v335
        %v344 = vmul.f32 %v336, %v336
        %v345 = vmul.f32 %v337, %v337
        %v346 = vmul.f32 %v338, %v338
        %v347 = vmul.f32 %v339, %v339
        %v348 = vld [vmem:[#allocation2] sm:$0xff]
        %v349 = vld [vmem:[#allocation2 + $0x8] sm:$0xff]
        %v350 = vld [vmem:[#allocation2 + $0x10] sm:$0xff]
        %v351 = vld [vmem:[#allocation2 + $0x18] sm:$0xff]
        %v352 = vld [vmem:[#allocation2 + $0x20] sm:$0xff]
        %v353 = vld [vmem:[#allocation2 + $0x28] sm:$0xff]
        %v354 = vld [vmem:[#allocation2 + $0x30] sm:$0xff]
        %v355 = vld [vmem:[#allocation2 + $0x38] sm:$0xff]
        %v356 = vadd.f32 %v340, 0.0
        %v357 = vadd.f32 %v341, 0.0
        %v358 = vadd.f32 %v342, 0.0
        %v359 = vadd.f32 %v343, 0.0
        %v360 = vadd.f32 %v344, 0.0
        %v361 = vadd.f32 %v345, 0.0
        %v362 = vadd.f32 %v346, 0.0
        %v363 = vadd.f32 %v347, 0.0
        %v364 = vadd.f32 %v348, %v356
        %v365 = vadd.f32 %v349, %v357
        %v366 = vadd.f32 %v350, %v358
        %v367 = vadd.f32 %v351, %v359
        %v368 = vadd.f32 %v352, %v360
        %v369 = vadd.f32 %v353, %v361
        %v370 = vadd.f32 %v354, %v362
        %v371 = vadd.f32 %v355, %v363
        %372 = vst [vmem:[#allocation2] sm:$0xff] %v364
        %373 = vst [vmem:[#allocation2 + $0x8] sm:$0xff] %v365
        %374 = vst [vmem:[#allocation2 + $0x10] sm:$0xff] %v366
        %375 = vst [vmem:[#allocation2 + $0x18] sm:$0xff] %v367
        %376 = vst [vmem:[#allocation2 + $0x20] sm:$0xff] %v368
        %377 = vst [vmem:[#allocation2 + $0x28] sm:$0xff] %v369
        %378 = vst [vmem:[#allocation2 + $0x30] sm:$0xff] %v370
        %379 = vst [vmem:[#allocation2 + $0x38] sm:$0xff] %v371
        // Predicated region
        $region53: #{tpu_custom_call.1} parent=39 // pred_check
          %p380 = pneg %p304
        $region54: #{tpu_custom_call.1} parent=39 // pred_check_branch
          %382 = sbr.rel (%p380) target = $region56
        $region55: #{tpu_custom_call.1} parent=39 // pred_region
          %v383 = vld [vmem:[#allocation2] sm:$0xff]
          %v384 = vld [vmem:[#allocation2 + $0x8] sm:$0xff]
          %v385 = vld [vmem:[#allocation2 + $0x10] sm:$0xff]
          %v386 = vld [vmem:[#allocation2 + $0x18] sm:$0xff]
          %v387 = vld [vmem:[#allocation2 + $0x20] sm:$0xff]
          %v388 = vld [vmem:[#allocation2 + $0x28] sm:$0xff]
          %v389 = vld [vmem:[#allocation2 + $0x30] sm:$0xff]
          %v390 = vld [vmem:[#allocation2 + $0x38] sm:$0xff]
          %v391 = vadd.f32 %v383, %v384
          %v392 = vadd.f32 %v391, %v385
          %v393 = vadd.f32 %v392, %v386
          %v394 = vadd.f32 %v393, %v387
          %v395 = vadd.f32 %v394, %v388
          %v396 = vadd.f32 %v395, %v389
          %v397 = vadd.f32 %v396, %v390
          %398 = vadd.xlane.f32.xlu0 %v397
          %v399 = vpop.xlane.xlu0 %398
          %v400 = vrot.slane %v399, 4
          %v401 = vadd.f32 %v399, %v400
          %v402 = vrot.slane %v401, 2
          %v403 = vadd.f32 %v401, %v402
          %v404 = vrot.slane %v403, 1
          %v405 = vadd.f32 %v403, %v404
          %s406 = vtos %v405
          %v407 = vld [vmem:[%s3] sm:$0x3]
          %v408 = vld [vmem:[%s4] sm:$0x3]
          %v409 = vadd.f32 %v408, 1.0
          %v410 = vmul.f32 %v407, %v407
          %v411 = vsub.f32 %v409, %v410
          %v412 = vmul.f32 %v408, 1.442695
          %v413 = vpow.pop %v412
          %v414 = vsub.f32 %v411, %v413
          %vm415 = vcmask 254976
          %v416 = vsel %vm415, %v414, 0.0
          %417 = vadd.xlane.f32.xlu0 %v416
          %v418 = vpop.xlane.xlu0 %417
          %v419 = vrot.slane %v418, 4
          %v420 = vadd.f32 %v418, %v419
          %v421 = vrot.slane %v420, 2
          %v422 = vadd.f32 %v420, %v421
          %v423 = vrot.slane %v422, 1
          %v424 = vadd.f32 %v422, %v423
          %s425 = vtos %v424
          %s426 = smul.f32 %s425, -0.5
          %p427 = scmp.eq.s32.totalorder %s30, 0
          %s428 = sld [smem:[#allocation3]]
          %s429 = smul.f32 %s428, %s426
          %s430 = scalar_select %p427, %s429, 0.0
          %s431 = sadd.f32 %s406, %s430
          %v432 = vstv %s431
          %433 = vst [vmem:[%s301] sm:$0xff] %v432
        $region56: #{tpu_custom_call.1} parent=39 // pred_fallthru
          _
        %s434 = sand.u32 %s165, 1
        %s435 = scalar_lea.sflag [#allocation6], %s434
        %s436 = sand.u32 %s165, 1
        %s437 = smul.addr %s436, 8
        %s438 = scalar_lea.vmem [#allocation9], %s437
        // Predicated region
        $region57: #{tpu_custom_call.1} parent=39 // pred_check
          %p439 = pneg %p175
        $region58: #{tpu_custom_call.1} parent=39 // pred_check_branch
          %441 = sbr.rel (%p439) target = $region60
        $region59: #{tpu_custom_call.1} parent=39 // pred_region
          %443 = vsyncadd %s435, 0
          %s444 = smul.addr %s30, 8
          %s445 = scalar_lea.hbm %s5, %s444
          %s447 = sshll.u32 %s438, 4
          %s448 = int_to_ptr.vmem [resolvable:$true] %s447
          %s449 = sshll.u32 %s445, 4
          %s450 = int_to_ptr.hbm [resolvable:$true] %s449
          %452 = dma.vmem_to_hbm [thread:$0]  %s448, 128, %s450, %s435
        $region60: #{tpu_custom_call.1} parent=39 // pred_fallthru
          _
      $region40: #{tpu_custom_call.1} parent=5 // pred_fallthru
        _
      %p453 = scmp.le.s32.totalorder 2, %s21
      // Predicated region
      $region61: #{tpu_custom_call.1} parent=5 // pred_check
        %p454 = pneg %p453
      $region62: #{tpu_custom_call.1} parent=5 // pred_check_branch
        %456 = sbr.rel (%p454) target = $region64
      $region63: #{tpu_custom_call.1} parent=5 // pred_region
        %s457 = ssub.s32 %s21, 2
        // Predicated region
        $region65: #{tpu_custom_call.1} parent=63 // pred_check
          %p458 = pneg %p181
        $region66: #{tpu_custom_call.1} parent=63 // pred_check_branch
          %460 = sbr.rel (%p458) target = $region68
        $region67: #{tpu_custom_call.1} parent=63 // pred_region
          %s461 = sand.u32 %s166, 1
          %s462 = scalar_lea.sflag [#allocation6], %s461
          %s463 = sand.u32 %s166, 1
          %s464 = smul.addr %s463, 8
          %s465 = scalar_lea.vmem [#allocation9], %s464
          %467 = dma.done %s462, 128
        $region68: #{tpu_custom_call.1} parent=63 // pred_fallthru
          _
      $region64: #{tpu_custom_call.1} parent=5 // pred_fallthru
        _
    $region6: #{tpu_custom_call.1} parent=1 // loop_footer
      %s25 = sadd.s32 1, %s21
    $region7: #{tpu_custom_call.1} parent=1 // loop_footer_branch
      %20 = sbr.rel target = $region3
    $region8: #{tpu_custom_call.1} parent=1 // loop_exit
      _
    %468 = vsyncpa [#allocation5], 1
    %s469 = scalar_lea.sflag [#allocation5], 1
    %470 = vsyncpa %s469, 1
    %471 = vsyncpa [#allocation8], 1
    %s472 = scalar_lea.sflag [#allocation8], 1
    %473 = vsyncpa %s472, 1
    %474 = vsyncpa [#allocation6], 1
    %s475 = scalar_lea.sflag [#allocation6], 1
    %476 = vsyncpa %s475, 1

</llo_original>
